<compile_context>
chip_gen: v7x
topology: tpu7x:2x2x1
jax: 0.10.0
libtpu: 0.0.40
codegen_flags: <defaults>
</compile_context>

<pallas_src>
import jax
import jax.numpy as jnp
from jax.experimental import pallas as pl
from jax.experimental.pallas import tpu as pltpu

LANES = 128
MAX_TILE_ROWS = 2048  # 2048 x 128 x 4 B = 1 MiB per f32 input tile


def _make_depth_tile_kernel(tile_rows, total_rows, needs_row_mask):
    """Kernel closure over static tiling params.

    One (tile_rows, 128) tile of real/synth -> one (1, 2, 8, 128) block holding
    [masked |diff| partial sum, mask partial count], reduced only across vregs
    (VPU adds), never across lanes/sublanes.
    """
    groups = tile_rows // 8  # tile_rows is always a multiple of 8

    def kernel(real_ref, synth_ref, out_ref):
        r = real_ref[...].astype(jnp.float32)
        s = synth_ref[...].astype(jnp.float32)
        mask = (r < 0.99) & (s < 0.99)
        if needs_row_mask:
            # Last grid tile is partial: invalidate rows past the real extent.
            row = (pl.program_id(0) * tile_rows
                   + jax.lax.broadcasted_iota(jnp.int32, r.shape, 0))
            mask = mask & (row < total_rows)
        masked_abs = jnp.where(mask, jnp.abs(r - s), 0.0)
        cnt = mask.astype(jnp.float32)
        out_ref[0, 0] = jnp.sum(masked_abs.reshape(groups, 8, LANES), axis=0)
        out_ref[0, 1] = jnp.sum(cnt.reshape(groups, 8, LANES), axis=0)

    return kernel


def _masked_sum_cnt_jax(r, s):
    """Plain-JAX masked |diff| sum / count for the tiny (<128 elem) flat tail."""
    r = r.astype(jnp.float32)
    s = s.astype(jnp.float32)
    mask = (r < 0.99) & (s < 0.99)
    return (jnp.sum(jnp.where(mask, jnp.abs(r - s), 0.0)),
            jnp.sum(mask.astype(jnp.float32)))


def depth_loss_pallas(real, synth, *, max_tile_rows=MAX_TILE_ROWS):
    """smooth=False depth_loss forward. real/synth: same-shape float arrays."""
    assert real.shape == synth.shape
    n = 1
    for d in real.shape:
        n *= d

    flat_r = real.reshape(-1)
    flat_s = synth.reshape(-1)

    rows = n // LANES
    n_rows_elems = rows * LANES

    # Sub-lane tail (< 128 elements): negligible traffic, plain JAX.
    if n_rows_elems < n:
        rem_sum, rem_cnt = _masked_sum_cnt_jax(flat_r[n_rows_elems:],
                                               flat_s[n_rows_elems:])
    else:
        rem_sum = jnp.float32(0.0)
        rem_cnt = jnp.float32(0.0)

    if rows == 0:
        total_sum, total_cnt = rem_sum, rem_cnt
    else:
        # Sublane granularity so blocks respect TPU packing for narrow dtypes
        # too (f32 -> 8 rows, bf16 -> 16, int8/fp8 -> 32).
        itemsize = jnp.dtype(real.dtype).itemsize
        gran = 8 * max(1, 4 // max(1, itemsize))
        max_tile_rows = max(gran, (max_tile_rows // gran) * gran)
        tile_rows = min(max_tile_rows, ((rows + gran - 1) // gran) * gran)
        num_tiles = (rows + tile_rows - 1) // tile_rows
        needs_row_mask = (rows % tile_rows) != 0

        if n % LANES == 0:
            # Free reshape of the full contiguous tensor.
            r2 = real.reshape(rows, LANES)
            s2 = synth.reshape(rows, LANES)
        else:
            # Rare unaligned case: one bulk slice is unavoidable for a 2-D view.
            r2 = flat_r[:n_rows_elems].reshape(rows, LANES)
            s2 = flat_s[:n_rows_elems].reshape(rows, LANES)

        partials = pl.pallas_call(
            _make_depth_tile_kernel(tile_rows, rows, needs_row_mask),
            out_shape=jax.ShapeDtypeStruct((num_tiles, 2, 8, LANES), jnp.float32),
            grid_spec=pltpu.PrefetchScalarGridSpec(
                num_scalar_prefetch=0,
                grid=(num_tiles,),
                in_specs=[
                    pl.BlockSpec((tile_rows, LANES), lambda i: (i, 0)),
                    pl.BlockSpec((tile_rows, LANES), lambda i: (i, 0)),
                ],
                out_specs=pl.BlockSpec((1, 2, 8, LANES), lambda i: (i, 0, 0, 0)),
            ),
            compiler_params=pltpu.CompilerParams(
                dimension_semantics=("parallel",),
            ),
        )(r2, s2)

        per = jnp.sum(partials, axis=(0, 2, 3))  # -> (2,): [sum, count]
        total_sum = per[0] + rem_sum
        total_cnt = per[1] + rem_cnt

    # 0/0 -> NaN matches torch.mean over an empty masked_select.
    return (total_sum / total_cnt).astype(jnp.float32)


def depth_loss_ref(real, synth):
    """Pure-JAX reference of the smooth=False forward."""
    r = real.astype(jnp.float32)
    s = synth.astype(jnp.float32)
    mask = (r < 0.99) & (s < 0.99)
    return jnp.sum(jnp.abs(r - s) * mask) / jnp.sum(mask.astype(jnp.float32))


if __name__ == "__main__":
    key = jax.random.PRNGKey(0)
    k1, k2 = jax.random.split(key)
    # Depth-like maps in [0, 1.2] so some values exceed the 0.99 threshold.
    real = jax.random.uniform(k1, (2, 4, 16, 16), jnp.float32, 0.0, 1.2)
    synth = jax.random.uniform(k2, (2, 4, 16, 16), jnp.float32, 0.0, 1.2)

    loss_fn = jax.jit(depth_loss_pallas)
    loss = jax.block_until_ready(loss_fn(real, synth))
    ref = jax.block_until_ready(depth_loss_ref(real, synth))
    assert jnp.allclose(loss, ref, rtol=1e-5, atol=1e-6), (loss, ref)

    # Multiple tiles + partial (row-masked) last tile inside the kernel.
    k3, k4 = jax.random.split(k2)
    real2 = jax.random.uniform(k3, (2, 4, 48, 48), jnp.float32, 0.0, 1.2)
    synth2 = jax.random.uniform(k4, (2, 4, 48, 48), jnp.float32, 0.0, 1.2)
    loss2 = jax.block_until_ready(
        depth_loss_pallas(real2, synth2, max_tile_rows=32))
    ref2 = jax.block_until_ready(depth_loss_ref(real2, synth2))
    assert jnp.allclose(loss2, ref2, rtol=1e-5, atol=1e-6), (loss2, ref2)

    # Total not divisible by 128: exercises the plain-JAX sub-lane tail as well.
    k5, k6 = jax.random.split(k4)
    real3 = jax.random.uniform(k5, (2, 3, 50, 17), jnp.float32, 0.0, 1.2)
    synth3 = jax.random.uniform(k6, (2, 3, 50, 17), jnp.float32, 0.0, 1.2)
    loss3 = jax.block_until_ready(depth_loss_pallas(real3, synth3))
    ref3 = jax.block_until_ready(depth_loss_ref(real3, synth3))
    assert jnp.allclose(loss3, ref3, rtol=1e-5, atol=1e-6), (loss3, ref3)

    print("KERNEL_OK")
</pallas_src>

<mosaic_0001>
module attributes {stable_mosaic.version = 11 : i64} {
  func.func @kernel(%arg0: i32, %arg1: memref<16x128xf32, #tpu.memory_space<vmem>>, %arg2: memref<16x128xf32, #tpu.memory_space<vmem>>, %arg3: memref<1x2x8x128xf32, #tpu.memory_space<vmem>>) attributes {dimension_semantics = [#tpu.dimension_semantics<parallel>], iteration_bounds = array<i64: 1>, scalar_prefetch = 0 : i64, scratch_operands = 0 : i64, tpu.core_type = #tpu.core_type<tc>, window_params = [{transform_indices = @transform_0, window_bounds = array<i64: 16, 128>}, {transform_indices = @transform_1, window_bounds = array<i64: 16, 128>}, {transform_indices = @transform_2, window_bounds = array<i64: 1, 2, 8, 128>}]} {
    %c0 = arith.constant 0 : index
    %c0_0 = arith.constant 0 : index
    %0 = vector.load %arg1[%c0, %c0_0] : memref<16x128xf32, #tpu.memory_space<vmem>>, vector<16x128xf32>
    %c0_1 = arith.constant 0 : index
    %c0_2 = arith.constant 0 : index
    %1 = vector.load %arg2[%c0_1, %c0_2] : memref<16x128xf32, #tpu.memory_space<vmem>>, vector<16x128xf32>
    %cst = arith.constant 9.900000e-01 : f32
    %2 = vector.broadcast %cst : f32 to vector<16x128xf32>
    %3 = arith.cmpf olt, %0, %2 : vector<16x128xf32>
    %cst_3 = arith.constant 9.900000e-01 : f32
    %4 = vector.broadcast %cst_3 : f32 to vector<16x128xf32>
    %5 = arith.cmpf olt, %1, %4 : vector<16x128xf32>
    %6 = arith.andi %3, %5 : vector<16x128xi1>
    %7 = arith.subf %0, %1 : vector<16x128xf32>
    %8 = math.absf %7 : vector<16x128xf32>
    %cst_4 = arith.constant 0.000000e+00 : f32
    %9 = vector.broadcast %cst_4 : f32 to vector<16x128xf32>
    %10 = arith.select %6, %8, %9 : vector<16x128xi1>, vector<16x128xf32>
    %11 = arith.extui %6 : vector<16x128xi1> to vector<16x128xi32>
    %12 = arith.sitofp %11 : vector<16x128xi32> to vector<16x128xf32>
    %13 = vector.shape_cast %10 : vector<16x128xf32> to vector<2x8x128xf32>
    %cst_5 = arith.constant dense<0.000000e+00> : vector<8x128xf32>
    %14 = vector.multi_reduction <add>, %13, %cst_5 [0] : vector<2x8x128xf32> to vector<8x128xf32>
    %c0_6 = arith.constant 0 : index
    %c0_7 = arith.constant 0 : index
    %c0_8 = arith.constant 0 : index
    %c0_9 = arith.constant 0 : index
    %15 = vector.load %arg3[%c0_6, %c0_7, %c0_8, %c0_9] : memref<1x2x8x128xf32, #tpu.memory_space<vmem>>, vector<1x1x8x128xf32>
    %16 = vector.shape_cast %15 : vector<1x1x8x128xf32> to vector<8x128xf32>
    %17 = vector.shape_cast %14 : vector<8x128xf32> to vector<1x1x8x128xf32>
    tpu.vector_store %arg3[%c0_6, %c0_7, %c0_8, %c0_9], %17 {strides = array<i32>} : memref<1x2x8x128xf32, #tpu.memory_space<vmem>>, vector<1x1x8x128xf32>,
    %18 = vector.shape_cast %12 : vector<16x128xf32> to vector<2x8x128xf32>
    %cst_10 = arith.constant dense<0.000000e+00> : vector<8x128xf32>
    %19 = vector.multi_reduction <add>, %18, %cst_10 [0] : vector<2x8x128xf32> to vector<8x128xf32>
    %c0_11 = arith.constant 0 : index
    %c1 = arith.constant 1 : index
    %c0_12 = arith.constant 0 : index
    %c0_13 = arith.constant 0 : index
    %20 = vector.load %arg3[%c0_11, %c1, %c0_12, %c0_13] : memref<1x2x8x128xf32, #tpu.memory_space<vmem>>, vector<1x1x8x128xf32>
    %21 = vector.shape_cast %20 : vector<1x1x8x128xf32> to vector<8x128xf32>
    %22 = vector.shape_cast %19 : vector<8x128xf32> to vector<1x1x8x128xf32>
    tpu.vector_store %arg3[%c0_11, %c1, %c0_12, %c0_13], %22 {strides = array<i32>} : memref<1x2x8x128xf32, #tpu.memory_space<vmem>>, vector<1x1x8x128xf32>,
    return
  }
  func.func @transform_0(%arg0: i32) -> (i32, i32) {
    %c0_i32 = arith.constant 0 : i32
    %c0_i32_0 = arith.constant 0 : i32
    return %arg0, %c0_i32 : i32, i32
  }
  func.func @transform_1(%arg0: i32) -> (i32, i32) {
    %c0_i32 = arith.constant 0 : i32
    %c0_i32_0 = arith.constant 0 : i32
    return %arg0, %c0_i32 : i32, i32
  }
  func.func @transform_2(%arg0: i32) -> (i32, i32, i32, i32) {
    %c0_i32 = arith.constant 0 : i32
    %c0_i32_0 = arith.constant 0 : i32
    %c0_i32_1 = arith.constant 0 : i32
    %c0_i32_2 = arith.constant 0 : i32
    return %arg0, %c0_i32, %c0_i32_0, %c0_i32_1 : i32, i32, i32, i32
  }
}

</mosaic_0001>

<llo_original>
// kernel: depth_loss_pallas.1
$region0: #{depth_loss_pallas.1}
  #allocation0 [shape = 'u32[]', space=smem, size = 0x4, offset = 0x4, fixed_abs, tag = 'smem constant byte address 0x4 - core index']
  #allocation1 [shape = 'u32[144,128]{1,0:T(1,128)}', space=vmem, size = 0x12000, scoped, tag = 'internal scratch']
  %s0 = inlined_call_operand.vmem [shape: f32[16,128], index: 0, kind: input, shape index: {}]
  %s1 = inlined_call_operand.vmem [shape: f32[16,128], index: 1, kind: input, shape index: {}]
  %s2 = inlined_call_operand.vmem [shape: f32[1,2,8,128], index: 2, kind: output, shape index: {}]
  %s3 = sld [smem:[#allocation0]]
  $region18: #{depth_loss_pallas.1} parent=0
    _
  %s5 = ssub.s32 1, %s3
  %s6 = scalar_select 0, %s5, %s3
  // Predicated region
  $region2: #{depth_loss_pallas.1} parent=0 // pred_check
    _
  $region3: #{depth_loss_pallas.1} parent=0 // pred_check_branch
    %8 = sbr.rel (0) target = $region5
  $region4: #{depth_loss_pallas.1} parent=0 // pred_region
    _
  $region5: #{depth_loss_pallas.1} parent=0 // pred_fallthru
    _
  // Predicated region
  $region6: #{depth_loss_pallas.1} parent=0 // pred_check
    _
  $region7: #{depth_loss_pallas.1} parent=0 // pred_check_branch
    %10 = sbr.rel (0) target = $region9
  $region8: #{depth_loss_pallas.1} parent=0 // pred_region
    _
  $region9: #{depth_loss_pallas.1} parent=0 // pred_fallthru
    _
  %v11 = vld [vmem:[%s0] sm:$0xff]
  %v12 = vld [vmem:[%s0 + $0x8] sm:$0xff]
  %v13 = vld [vmem:[%s1] sm:$0xff]
  %v14 = vld [vmem:[%s1 + $0x8] sm:$0xff]
  %vm15 = vcmp.lt.f32.partialorder %v11, 0.99
  %vm16 = vcmp.lt.f32.partialorder %v12, 0.99
  %vm17 = vcmp.lt.f32.partialorder %v13, 0.99
  %vm18 = vcmp.lt.f32.partialorder %v14, 0.99
  %vm19 = vmand %vm15, %vm17
  %vm20 = vmand %vm16, %vm18
  %v21 = vsub.f32 %v11, %v13
  %v22 = vsub.f32 %v12, %v14
  %v23 = vand.u32 2147483647, %v21
  %v24 = vand.u32 2147483647, %v22
  %v25 = vsel %vm19, %v23, 0.0
  %v26 = vsel %vm20, %v24, 0.0
  %v27 = vsel %vm19, 1, 0
  %v28 = vsel %vm20, 1, 0
  %v29 = vcvt.s32.f32 %v27
  %v30 = vcvt.s32.f32 %v28
  %v31 = vadd.f32 %v25, %v26
  %32 = vst [vmem:[%s2] sm:$0xff] %v31
  %v33 = vadd.f32 %v29, %v30
  %s34 = scalar_lea.vmem %s2, 8
  %35 = vst [vmem:[%s34] sm:$0xff] %v33
  // Predicated region
  $region10: #{depth_loss_pallas.1} parent=0 // pred_check
    _
  $region11: #{depth_loss_pallas.1} parent=0 // pred_check_branch
    %37 = sbr.rel (0) target = $region13
  $region12: #{depth_loss_pallas.1} parent=0 // pred_region
    _
  $region13: #{depth_loss_pallas.1} parent=0 // pred_fallthru
    _
  // Predicated region
  $region14: #{depth_loss_pallas.1} parent=0 // pred_check
    _
  $region15: #{depth_loss_pallas.1} parent=0 // pred_check_branch
    %39 = sbr.rel (0) target = $region17
  $region16: #{depth_loss_pallas.1} parent=0 // pred_region
    _
  $region17: #{depth_loss_pallas.1} parent=0 // pred_fallthru
    _

</llo_original>
